<compile_context>
chip_gen: v7x
topology: tpu7x:2x2x1
jax: 0.10.0
libtpu: 0.0.40
codegen_flags: <defaults>
</compile_context>

<pallas_src>
import jax
import jax.numpy as jnp
from jax import lax
from jax.experimental import pallas as pl
from jax.experimental.pallas import tpu as pltpu


def _make_tv_kernel(p, cp, n_chunks, n_planes, total_blocks):
    """Build the TV-loss kernel for a fixed static tiling.

    p            : planes per grid block (multiple of cp)
    cp           : planes per inner chunk (bounds live f32 temporaries)
    n_chunks     : p // cp
    n_planes     : total number of (H, W) planes in the input
    total_blocks : cdiv(n_planes, p)
    """
    rem = n_planes - (total_blocks - 1) * p      # valid planes in last block, in (0, p]
    full_tail_chunks = rem // cp                 # unmasked chunks in the last block
    tail_planes = rem % cp                       # valid planes in its final partial chunk

    def _chunk_sums(x_ref, start, mask=None):
        # One chunk of cp planes: native-dtype neighbour diffs, f32 square+sum.
        xc = x_ref[pl.ds(start, cp)]                                  # (cp, H, W)
        dh = (xc[:, 1:, :] - xc[:, :-1, :]).astype(jnp.float32)      # (cp, H-1, W)
        dw = (xc[:, :, 1:] - xc[:, :, :-1]).astype(jnp.float32)      # (cp, H, W-1)
        dh2 = dh * dh
        dw2 = dw * dw
        if mask is not None:
            # jnp.where (not multiply) so garbage in masked-out planes cannot
            # propagate NaN/Inf into the sum.
            dh2 = jnp.where(mask, dh2, 0.0)
            dw2 = jnp.where(mask, dw2, 0.0)
        return jnp.sum(dh2), jnp.sum(dw2)

    def _full_block(x_ref):
        if n_chunks == 1:
            return _chunk_sums(x_ref, 0)

        def body(j, carry):
            hs, ws = carry
            h, w = _chunk_sums(x_ref, pl.multiple_of(j * cp, cp))
            return hs + h, ws + w

        return lax.fori_loop(0, n_chunks, body,
                             (jnp.float32(0.0), jnp.float32(0.0)),
                             unroll=(n_chunks <= 8))

    def _tail_block(x_ref):
        # Last (partial) block: everything about it is static (rem is known),
        # so the loop and the plane-validity mask are compile-time constants.
        hs = jnp.float32(0.0)
        ws = jnp.float32(0.0)
        for j in range(full_tail_chunks):
            h, w = _chunk_sums(x_ref, j * cp)
            hs, ws = hs + h, ws + w
        if tail_planes:
            mask = lax.broadcasted_iota(jnp.int32, (cp, 1, 1), 0) < tail_planes
            h, w = _chunk_sums(x_ref, full_tail_chunks * cp, mask=mask)
            hs, ws = hs + h, ws + w
        return hs, ws

    def kernel(x_ref, out_ref):
        # x_ref:   (p, H, W) native-dtype block of whole planes.
        # out_ref: (1, 1, 128) f32 lane-dense partial row for this block.
        def write(h_part, w_part):
            lane = lax.broadcasted_iota(jnp.int32, (1, 1, 128), 2)
            out_ref[...] = jnp.where(lane == 0, h_part,
                                     jnp.where(lane == 1, w_part, 0.0))

        if rem == p:
            # Block shape divides n_planes exactly: no masking anywhere.
            h_part, w_part = _full_block(x_ref)
            write(h_part, w_part)
        else:
            bi = pl.program_id(0)

            @pl.when(bi < total_blocks - 1)
            def _():
                h_part, w_part = _full_block(x_ref)
                write(h_part, w_part)

            @pl.when(bi == total_blocks - 1)
            def _():
                h_part, w_part = _tail_block(x_ref)
                write(h_part, w_part)

    return kernel


def tv_loss(x, tv_loss_weight=1.0, *,
            target_block_bytes=8 * 1024 * 1024,
            target_chunk_bytes=1 * 1024 * 1024):
    """Total-variation loss matching PyTorch TVLoss.forward (NCHW input)."""
    b, c, h, w = x.shape
    if h < 2 or w < 2:
        # Same count_h/count_w == 0 hazard as the PyTorch original.
        raise ValueError("TVLoss requires H >= 2 and W >= 2")

    n_planes = b * c
    x_flat = x.reshape(n_planes, h, w)            # native dtype, no f32 copy

    plane_bytes = h * w * x.dtype.itemsize        # HBM bytes per plane
    plane_f32_bytes = h * w * 4                   # f32 temporary bytes per plane

    # Planes per block (HBM streaming target) and per chunk (f32 temp bound).
    p_raw = int(max(1, min(n_planes, target_block_bytes // max(plane_bytes, 1))))
    cp = int(max(1, min(p_raw, target_chunk_bytes // max(plane_f32_bytes, 1))))
    p = max(cp, (p_raw // cp) * cp)               # multiple of cp, <= p_raw <= n_planes
    n_chunks = p // cp
    total_blocks = -(-n_planes // p)              # cdiv; only the last block is partial

    kernel = _make_tv_kernel(p, cp, n_chunks, n_planes, total_blocks)

    # 2x double-buffered input block + a few chunk-sized f32 temporaries.
    block_bytes = p * plane_bytes
    chunk_f32_bytes = cp * plane_f32_bytes
    vmem_limit = int(max(32 * 1024 * 1024,
                         2 * block_bytes + 8 * chunk_f32_bytes + (2 << 20)))

    partial = pl.pallas_call(
        kernel,
        out_shape=jax.ShapeDtypeStruct((total_blocks, 1, 128), jnp.float32),
        grid_spec=pltpu.PrefetchScalarGridSpec(
            num_scalar_prefetch=0,
            grid=(total_blocks,),
            in_specs=[pl.BlockSpec((p, h, w), lambda i: (i, 0, 0))],
            out_specs=pl.BlockSpec((1, 1, 128), lambda i: (i, 0, 0)),
        ),
        compiler_params=pltpu.CompilerParams(
            dimension_semantics=("parallel",),
            vmem_limit_bytes=vmem_limit,
        ),
    )(x_flat)

    h_tv = jnp.sum(partial[:, 0, 0])
    w_tv = jnp.sum(partial[:, 0, 1])

    count_h = c * (h - 1) * w    # tensor_size(x[:, :, 1:, :])
    count_w = c * h * (w - 1)    # tensor_size(x[:, :, :, 1:])
    return tv_loss_weight * 2.0 * (h_tv / count_h + w_tv / count_w) / b


def _tv_loss_ref(x, tv_loss_weight=1.0):
    b, c, h, w = x.shape
    x = x.astype(jnp.float32)
    count_h = c * (h - 1) * w
    count_w = c * h * (w - 1)
    h_tv = jnp.sum((x[:, :, 1:, :] - x[:, :, :-1, :]) ** 2)
    w_tv = jnp.sum((x[:, :, :, 1:] - x[:, :, :, :-1]) ** 2)
    return tv_loss_weight * 2.0 * (h_tv / count_h + w_tv / count_w) / b


if __name__ == "__main__":
    key = jax.random.PRNGKey(0)
    x = jax.random.normal(key, (2, 4, 16, 16), dtype=jnp.float32)

    # 1) Default path: one block, one chunk, no masking.
    out = jax.block_until_ready(tv_loss(x, tv_loss_weight=1.0))
    ref = _tv_loss_ref(x, tv_loss_weight=1.0)
    assert jnp.allclose(out, ref, rtol=1e-5, atol=1e-5), (out, ref)

    # 2) Force small blocks: 3 planes/block -> 3 blocks, masked partial tail
    #    (no wrapper-side padding/concat).
    out_s = jax.block_until_ready(
        tv_loss(x, tv_loss_weight=0.5, target_block_bytes=3 * 16 * 16 * 4))
    ref_s = _tv_loss_ref(x, tv_loss_weight=0.5)
    assert jnp.allclose(out_s, ref_s, rtol=1e-5, atol=1e-5), (out_s, ref_s)

    # 3) Multi-chunk inner loop: 4 planes/block, 2 planes/chunk, 2 blocks.
    out_c = jax.block_until_ready(
        tv_loss(x, target_block_bytes=4 * 16 * 16 * 4,
                target_chunk_bytes=2 * 16 * 16 * 4))
    assert jnp.allclose(out_c, ref, rtol=1e-5, atol=1e-5), (out_c, ref)

    # 4) Partial tail made of whole chunks (cp=1): static tail loop, no mask.
    out_t = jax.block_until_ready(
        tv_loss(x, target_block_bytes=3 * 16 * 16 * 4,
                target_chunk_bytes=1 * 16 * 16 * 4))
    assert jnp.allclose(out_t, ref, rtol=1e-5, atol=1e-5), (out_t, ref)

    # 5) Native bf16 streaming (diff in bf16, square+accumulate in f32).
    xb = x.astype(jnp.bfloat16)
    out_b = jax.block_until_ready(tv_loss(xb))
    ref_b = _tv_loss_ref(xb)
    assert jnp.allclose(out_b, ref_b, rtol=2e-2, atol=2e-2), (out_b, ref_b)

    print("KERNEL_OK")
</pallas_src>

<mosaic_0001>
module attributes {stable_mosaic.version = 11 : i64} {
  func.func @kernel(%arg0: i32, %arg1: memref<8x16x16xf32, #tpu.memory_space<vmem>>, %arg2: memref<1x1x128xf32, #tpu.memory_space<vmem>>) attributes {dimension_semantics = [#tpu.dimension_semantics<parallel>], iteration_bounds = array<i64: 1>, scalar_prefetch = 0 : i64, scratch_operands = 0 : i64, tpu.core_type = #tpu.core_type<tc>, window_params = [{transform_indices = @transform_0, window_bounds = array<i64: 8, 16, 16>}, {transform_indices = @transform_1, window_bounds = array<i64: 1, 1, 128>}]} {
    %c0 = arith.constant 0 : index
    %c0_0 = arith.constant 0 : index
    %c0_1 = arith.constant 0 : index
    %0 = vector.load %arg1[%c0, %c0_0, %c0_1] : memref<8x16x16xf32, #tpu.memory_space<vmem>>, vector<8x16x16xf32>
    %1 = vector.extract_strided_slice %0 {offsets = [0, 1, 0], sizes = [8, 15, 16], strides = [1, 1, 1]} : vector<8x16x16xf32> to vector<8x15x16xf32>
    %2 = vector.extract_strided_slice %0 {offsets = [0, 0, 0], sizes = [8, 15, 16], strides = [1, 1, 1]} : vector<8x16x16xf32> to vector<8x15x16xf32>
    %3 = arith.subf %1, %2 : vector<8x15x16xf32>
    %4 = vector.extract_strided_slice %0 {offsets = [0, 0, 1], sizes = [8, 16, 15], strides = [1, 1, 1]} : vector<8x16x16xf32> to vector<8x16x15xf32>
    %5 = vector.extract_strided_slice %0 {offsets = [0, 0, 0], sizes = [8, 16, 15], strides = [1, 1, 1]} : vector<8x16x16xf32> to vector<8x16x15xf32>
    %6 = arith.subf %4, %5 : vector<8x16x15xf32>
    %7 = arith.mulf %3, %3 : vector<8x15x16xf32>
    %8 = arith.mulf %6, %6 : vector<8x16x15xf32>
    %9 = vector.shape_cast %7 : vector<8x15x16xf32> to vector<1x8x15x16xf32>
    %cst = arith.constant dense<0.000000e+00> : vector<1xf32>
    %10 = vector.multi_reduction <add>, %9, %cst [1, 2, 3] : vector<1x8x15x16xf32> to vector<1xf32>
    %11 = vector.shape_cast %10 : vector<1xf32> to vector<1x1x1x1xf32>
    %12 = vector.extract %11[0, 0, 0, 0] : f32 from vector<1x1x1x1xf32>
    %13 = vector.shape_cast %8 : vector<8x16x15xf32> to vector<1x8x16x15xf32>
    %cst_2 = arith.constant dense<0.000000e+00> : vector<1xf32>
    %14 = vector.multi_reduction <add>, %13, %cst_2 [1, 2, 3] : vector<1x8x16x15xf32> to vector<1xf32>
    %15 = vector.shape_cast %14 : vector<1xf32> to vector<1x1x1x1xf32>
    %16 = vector.extract %15[0, 0, 0, 0] : f32 from vector<1x1x1x1xf32>
    %17 = tpu.iota {dimensions = array<i32: 2>} : vector<1x1x128xi32>
    %c0_i32 = arith.constant 0 : i32
    %18 = vector.broadcast %c0_i32 : i32 to vector<1x1x128xi32>
    %19 = arith.cmpi eq, %17, %18 : vector<1x1x128xi32>
    %c1_i32 = arith.constant 1 : i32
    %20 = vector.broadcast %c1_i32 : i32 to vector<1x1x128xi32>
    %21 = arith.cmpi eq, %17, %20 : vector<1x1x128xi32>
    %cst_3 = arith.constant 0.000000e+00 : f32
    %22 = vector.broadcast %16 : f32 to vector<1x1x128xf32>
    %23 = vector.broadcast %cst_3 : f32 to vector<1x1x128xf32>
    %24 = arith.select %21, %22, %23 : vector<1x1x128xi1>, vector<1x1x128xf32>
    %25 = vector.broadcast %12 : f32 to vector<1x1x128xf32>
    %26 = arith.select %19, %25, %24 : vector<1x1x128xi1>, vector<1x1x128xf32>
    %c0_4 = arith.constant 0 : index
    %c0_5 = arith.constant 0 : index
    %c0_6 = arith.constant 0 : index
    %27 = vector.load %arg2[%c0_4, %c0_5, %c0_6] : memref<1x1x128xf32, #tpu.memory_space<vmem>>, vector<1x1x128xf32>
    tpu.vector_store %arg2[%c0_4, %c0_5, %c0_6], %26 {strides = array<i32>} : memref<1x1x128xf32, #tpu.memory_space<vmem>>, vector<1x1x128xf32>,
    return
  }
  func.func @transform_0(%arg0: i32) -> (i32, i32, i32) {
    %c0_i32 = arith.constant 0 : i32
    %c0_i32_0 = arith.constant 0 : i32
    %c0_i32_1 = arith.constant 0 : i32
    return %arg0, %c0_i32, %c0_i32_0 : i32, i32, i32
  }
  func.func @transform_1(%arg0: i32) -> (i32, i32, i32) {
    %c0_i32 = arith.constant 0 : i32
    %c0_i32_0 = arith.constant 0 : i32
    %c0_i32_1 = arith.constant 0 : i32
    return %arg0, %c0_i32, %c0_i32_0 : i32, i32, i32
  }
}

</mosaic_0001>

<llo_original>
// kernel: tpu_custom_call.1
$region0: #{tpu_custom_call.1}
  #allocation0 [shape = 'u32[]', space=smem, size = 0x4, offset = 0x4, fixed_abs, tag = 'smem constant byte address 0x4 - core index']
  #allocation1 [shape = 'u32[144,128]{1,0:T(1,128)}', space=vmem, size = 0x12000, scoped, tag = 'internal scratch']
  %s0 = inlined_call_operand.hbm [shape: f32[8,16,16], index: 0, kind: input, shape index: {}]
  %s1 = inlined_call_operand.hbm [shape: f32[1,1,128], index: 1, kind: output, shape index: {}]
  %s2 = sld [smem:[#allocation0]]
  $region18: #{tpu_custom_call.1} parent=0
    _
  %s4 = ssub.s32 1, %s2
  %s5 = scalar_select 0, %s4, %s2
  $region1: #{tpu_custom_call.1} parent=0
    #allocation2 [shape = 'u8[65536]{0}', space=vmem, size = 0x10000, scoped, tag = 'input window, operand 0, single buffered']
    #allocation3 [shape = 's32[1]{0}', space=sflag, size = 0x4, scoped, tag = 'scoped memory for tpu_custom_call.1']
    #allocation4 [shape = 's32[1]{0}', space=sflag, size = 0x4, scoped, tag = 'scoped memory for tpu_custom_call.1']
    #allocation5 [shape = 'u8[512]{0}', space=vmem, size = 0x400, scoped, tag = 'output window, operand 0, single buffered']
    %6 = vsyncpa [#allocation3], 0
    %7 = vsyncpa [#allocation4], 0
    // Predicated region
    $region2: #{tpu_custom_call.1} parent=1 // pred_check
      _
    $region3: #{tpu_custom_call.1} parent=1 // pred_check_branch
      %9 = sbr.rel (0) target = $region5
    $region4: #{tpu_custom_call.1} parent=1 // pred_region
      %s11 = ssub.s32 2048, 2048
      %12 = vsyncadd [#allocation3], %s11
      %s13 = sshll.u32 [#allocation2], 4
      %s14 = int_to_ptr.vmem [resolvable:$true] %s13
      %19 = dma.hbm_to_vmem [thread:$0]  %s0, 2048, %s14, [#allocation3], 128, 128, 8
    $region5: #{tpu_custom_call.1} parent=1 // pred_fallthru
      _
    // Predicated region
    $region6: #{tpu_custom_call.1} parent=1 // pred_check
      _
    $region7: #{tpu_custom_call.1} parent=1 // pred_check_branch
      %21 = sbr.rel (0) target = $region9
    $region8: #{tpu_custom_call.1} parent=1 // pred_region
      %22 = dma.done [#allocation3], 2048
    $region9: #{tpu_custom_call.1} parent=1 // pred_fallthru
      _
    %v23 = vld [vmem:[#allocation2] sm:$0xff]
    %v24 = vld [vmem:[#allocation2 + $0x8] sm:$0xff]
    %v25 = vld [vmem:[#allocation2 + $0x10] sm:$0xff]
    %v26 = vld [vmem:[#allocation2 + $0x18] sm:$0xff]
    %v27 = vld [vmem:[#allocation2 + $0x20] sm:$0xff]
    %v28 = vld [vmem:[#allocation2 + $0x28] sm:$0xff]
    %v29 = vld [vmem:[#allocation2 + $0x30] sm:$0xff]
    %v30 = vld [vmem:[#allocation2 + $0x38] sm:$0xff]
    %v31 = vld [vmem:[#allocation2 + $0x40] sm:$0xff]
    %v32 = vld [vmem:[#allocation2 + $0x48] sm:$0xff]
    %v33 = vld [vmem:[#allocation2 + $0x50] sm:$0xff]
    %v34 = vld [vmem:[#allocation2 + $0x58] sm:$0xff]
    %v35 = vld [vmem:[#allocation2 + $0x60] sm:$0xff]
    %v36 = vld [vmem:[#allocation2 + $0x68] sm:$0xff]
    %v37 = vld [vmem:[#allocation2 + $0x70] sm:$0xff]
    %v38 = vld [vmem:[#allocation2 + $0x78] sm:$0xff]
    %vm55 = vcmask 1040384
    %v56 = vrot.slane %v23, 7
    %v57 = vrot.slane %v24, 7
    %v58 = vsel %vm55, %v56, %v57
    %v59 = vrot.slane %v25, 7
    %v60 = vrot.slane %v26, 7
    %v61 = vsel %vm55, %v59, %v60
    %v62 = vrot.slane %v27, 7
    %v63 = vrot.slane %v28, 7
    %v64 = vsel %vm55, %v62, %v63
    %v65 = vrot.slane %v29, 7
    %v66 = vrot.slane %v30, 7
    %v67 = vsel %vm55, %v65, %v66
    %v68 = vrot.slane %v31, 7
    %v69 = vrot.slane %v32, 7
    %v70 = vsel %vm55, %v68, %v69
    %v71 = vrot.slane %v33, 7
    %v72 = vrot.slane %v34, 7
    %v73 = vsel %vm55, %v71, %v72
    %v74 = vrot.slane %v35, 7
    %v75 = vrot.slane %v36, 7
    %v76 = vsel %vm55, %v74, %v75
    %v77 = vrot.slane %v37, 7
    %v78 = vrot.slane %v38, 7
    %v79 = vsel %vm55, %v77, %v78
    %v96 = vsub.f32 %v23, %v56
    %v97 = vsub.f32 %v24, %v58
    %v98 = vsub.f32 %v25, %v59
    %v99 = vsub.f32 %v26, %v61
    %v100 = vsub.f32 %v27, %v62
    %v101 = vsub.f32 %v28, %v64
    %v102 = vsub.f32 %v29, %v65
    %v103 = vsub.f32 %v30, %v67
    %v104 = vsub.f32 %v31, %v68
    %v105 = vsub.f32 %v32, %v70
    %v106 = vsub.f32 %v33, %v71
    %v107 = vsub.f32 %v34, %v73
    %v108 = vsub.f32 %v35, %v74
    %v109 = vsub.f32 %v36, %v76
    %v110 = vsub.f32 %v37, %v77
    %v111 = vsub.f32 %v38, %v79
    %112 = vrot.lane.b32.xlu0 %v23, 1
    %v113 = vpop.permute.xlu0 %112
    %114 = vrot.lane.b32.xlu0 %v24, 1
    %v115 = vpop.permute.xlu0 %114
    %116 = vrot.lane.b32.xlu0 %v25, 1
    %v117 = vpop.permute.xlu0 %116
    %118 = vrot.lane.b32.xlu0 %v26, 1
    %v119 = vpop.permute.xlu0 %118
    %120 = vrot.lane.b32.xlu0 %v27, 1
    %v121 = vpop.permute.xlu0 %120
    %122 = vrot.lane.b32.xlu0 %v28, 1
    %v123 = vpop.permute.xlu0 %122
    %124 = vrot.lane.b32.xlu0 %v29, 1
    %v125 = vpop.permute.xlu0 %124
    %126 = vrot.lane.b32.xlu0 %v30, 1
    %v127 = vpop.permute.xlu0 %126
    %128 = vrot.lane.b32.xlu0 %v31, 1
    %v129 = vpop.permute.xlu0 %128
    %130 = vrot.lane.b32.xlu0 %v32, 1
    %v131 = vpop.permute.xlu0 %130
    %132 = vrot.lane.b32.xlu0 %v33, 1
    %v133 = vpop.permute.xlu0 %132
    %134 = vrot.lane.b32.xlu0 %v34, 1
    %v135 = vpop.permute.xlu0 %134
    %136 = vrot.lane.b32.xlu0 %v35, 1
    %v137 = vpop.permute.xlu0 %136
    %138 = vrot.lane.b32.xlu0 %v36, 1
    %v139 = vpop.permute.xlu0 %138
    %140 = vrot.lane.b32.xlu0 %v37, 1
    %v141 = vpop.permute.xlu0 %140
    %142 = vrot.lane.b32.xlu0 %v38, 1
    %v143 = vpop.permute.xlu0 %142
    %v160 = vsub.f32 %v23, %v113
    %v161 = vsub.f32 %v24, %v115
    %v162 = vsub.f32 %v25, %v117
    %v163 = vsub.f32 %v26, %v119
    %v164 = vsub.f32 %v27, %v121
    %v165 = vsub.f32 %v28, %v123
    %v166 = vsub.f32 %v29, %v125
    %v167 = vsub.f32 %v30, %v127
    %v168 = vsub.f32 %v31, %v129
    %v169 = vsub.f32 %v32, %v131
    %v170 = vsub.f32 %v33, %v133
    %v171 = vsub.f32 %v34, %v135
    %v172 = vsub.f32 %v35, %v137
    %v173 = vsub.f32 %v36, %v139
    %v174 = vsub.f32 %v37, %v141
    %v175 = vsub.f32 %v38, %v143
    %v176 = vmul.f32 %v96, %v96
    %v177 = vmul.f32 %v97, %v97
    %v178 = vmul.f32 %v98, %v98
    %v179 = vmul.f32 %v99, %v99
    %v180 = vmul.f32 %v100, %v100
    %v181 = vmul.f32 %v101, %v101
    %v182 = vmul.f32 %v102, %v102
    %v183 = vmul.f32 %v103, %v103
    %v184 = vmul.f32 %v104, %v104
    %v185 = vmul.f32 %v105, %v105
    %v186 = vmul.f32 %v106, %v106
    %v187 = vmul.f32 %v107, %v107
    %v188 = vmul.f32 %v108, %v108
    %v189 = vmul.f32 %v109, %v109
    %v190 = vmul.f32 %v110, %v110
    %v191 = vmul.f32 %v111, %v111
    %v192 = vmul.f32 %v160, %v160
    %v193 = vmul.f32 %v161, %v161
    %v194 = vmul.f32 %v162, %v162
    %v195 = vmul.f32 %v163, %v163
    %v196 = vmul.f32 %v164, %v164
    %v197 = vmul.f32 %v165, %v165
    %v198 = vmul.f32 %v166, %v166
    %v199 = vmul.f32 %v167, %v167
    %v200 = vmul.f32 %v168, %v168
    %v201 = vmul.f32 %v169, %v169
    %v202 = vmul.f32 %v170, %v170
    %v203 = vmul.f32 %v171, %v171
    %v204 = vmul.f32 %v172, %v172
    %v205 = vmul.f32 %v173, %v173
    %v206 = vmul.f32 %v174, %v174
    %v207 = vmul.f32 %v175, %v175
    %vm224 = vcmask 1046528
    %v225 = vrot.slane %v176, 1
    %v226 = vrot.slane %v177, 1
    %v227 = vsel %vm224, %v225, %v226
    %v228 = vrot.slane %v178, 1
    %v229 = vrot.slane %v179, 1
    %v230 = vsel %vm224, %v228, %v229
    %v231 = vrot.slane %v180, 1
    %v232 = vrot.slane %v181, 1
    %v233 = vsel %vm224, %v231, %v232
    %v234 = vrot.slane %v182, 1
    %v235 = vrot.slane %v183, 1
    %v236 = vsel %vm224, %v234, %v235
    %v237 = vrot.slane %v184, 1
    %v238 = vrot.slane %v185, 1
    %v239 = vsel %vm224, %v237, %v238
    %v240 = vrot.slane %v186, 1
    %v241 = vrot.slane %v187, 1
    %v242 = vsel %vm224, %v240, %v241
    %v243 = vrot.slane %v188, 1
    %v244 = vrot.slane %v189, 1
    %v245 = vsel %vm224, %v243, %v244
    %v246 = vrot.slane %v190, 1
    %v247 = vrot.slane %v191, 1
    %v248 = vsel %vm224, %v246, %v247
    %vm265 = vcmask 130048
    %v266 = vsel %vm265, %v227, 0.0
    %vm267 = vcmask 129024
    %v268 = vsel %vm267, %v226, 0.0
    %v269 = vadd.f32 %v266, %v268
    %v270 = vsel %vm265, %v230, 0.0
    %v271 = vadd.f32 %v269, %v270
    %v272 = vsel %vm267, %v229, 0.0
    %v273 = vadd.f32 %v271, %v272
    %v274 = vsel %vm265, %v233, 0.0
    %v275 = vadd.f32 %v273, %v274
    %v276 = vsel %vm267, %v232, 0.0
    %v277 = vadd.f32 %v275, %v276
    %v278 = vsel %vm265, %v236, 0.0
    %v279 = vadd.f32 %v277, %v278
    %v280 = vsel %vm267, %v235, 0.0
    %v281 = vadd.f32 %v279, %v280
    %v282 = vsel %vm265, %v239, 0.0
    %v283 = vadd.f32 %v281, %v282
    %v284 = vsel %vm267, %v238, 0.0
    %v285 = vadd.f32 %v283, %v284
    %v286 = vsel %vm265, %v242, 0.0
    %v287 = vadd.f32 %v285, %v286
    %v288 = vsel %vm267, %v241, 0.0
    %v289 = vadd.f32 %v287, %v288
    %v290 = vsel %vm265, %v245, 0.0
    %v291 = vadd.f32 %v289, %v290
    %v292 = vsel %vm267, %v244, 0.0
    %v293 = vadd.f32 %v291, %v292
    %v294 = vsel %vm265, %v248, 0.0
    %v295 = vadd.f32 %v293, %v294
    %v296 = vsel %vm267, %v247, 0.0
    %v297 = vadd.f32 %v295, %v296
    %298 = vadd.xlane.f32.xlu0 %v297
    %v299 = vpop.xlane.xlu0 %298
    %v300 = vrot.slane %v299, 4
    %v301 = vadd.f32 %v299, %v300
    %v302 = vrot.slane %v301, 2
    %v303 = vadd.f32 %v301, %v302
    %v304 = vrot.slane %v303, 1
    %v305 = vadd.f32 %v303, %v304
    %s306 = vtos %v305
    %323 = vrot.lane.b32.xlu0 %v192, 127
    %v324 = vpop.permute.xlu0 %323
    %325 = vrot.lane.b32.xlu0 %v193, 127
    %v326 = vpop.permute.xlu0 %325
    %327 = vrot.lane.b32.xlu0 %v194, 127
    %v328 = vpop.permute.xlu0 %327
    %329 = vrot.lane.b32.xlu0 %v195, 127
    %v330 = vpop.permute.xlu0 %329
    %331 = vrot.lane.b32.xlu0 %v196, 127
    %v332 = vpop.permute.xlu0 %331
    %333 = vrot.lane.b32.xlu0 %v197, 127
    %v334 = vpop.permute.xlu0 %333
    %335 = vrot.lane.b32.xlu0 %v198, 127
    %v336 = vpop.permute.xlu0 %335
    %337 = vrot.lane.b32.xlu0 %v199, 127
    %v338 = vpop.permute.xlu0 %337
    %339 = vrot.lane.b32.xlu0 %v200, 127
    %v340 = vpop.permute.xlu0 %339
    %341 = vrot.lane.b32.xlu0 %v201, 127
    %v342 = vpop.permute.xlu0 %341
    %343 = vrot.lane.b32.xlu0 %v202, 127
    %v344 = vpop.permute.xlu0 %343
    %345 = vrot.lane.b32.xlu0 %v203, 127
    %v346 = vpop.permute.xlu0 %345
    %347 = vrot.lane.b32.xlu0 %v204, 127
    %v348 = vpop.permute.xlu0 %347
    %349 = vrot.lane.b32.xlu0 %v205, 127
    %v350 = vpop.permute.xlu0 %349
    %351 = vrot.lane.b32.xlu0 %v206, 127
    %v352 = vpop.permute.xlu0 %351
    %353 = vrot.lane.b32.xlu0 %v207, 127
    %v354 = vpop.permute.xlu0 %353
    %vm371 = vcmask 121856
    %v372 = vsel %vm371, %v324, 0.0
    %v373 = vsel %vm371, %v326, 0.0
    %v374 = vadd.f32 %v372, %v373
    %v375 = vsel %vm371, %v328, 0.0
    %v376 = vadd.f32 %v374, %v375
    %v377 = vsel %vm371, %v330, 0.0
    %v378 = vadd.f32 %v376, %v377
    %v379 = vsel %vm371, %v332, 0.0
    %v380 = vadd.f32 %v378, %v379
    %v381 = vsel %vm371, %v334, 0.0
    %v382 = vadd.f32 %v380, %v381
    %v383 = vsel %vm371, %v336, 0.0
    %v384 = vadd.f32 %v382, %v383
    %v385 = vsel %vm371, %v338, 0.0
    %v386 = vadd.f32 %v384, %v385
    %v387 = vsel %vm371, %v340, 0.0
    %v388 = vadd.f32 %v386, %v387
    %v389 = vsel %vm371, %v342, 0.0
    %v390 = vadd.f32 %v388, %v389
    %v391 = vsel %vm371, %v344, 0.0
    %v392 = vadd.f32 %v390, %v391
    %v393 = vsel %vm371, %v346, 0.0
    %v394 = vadd.f32 %v392, %v393
    %v395 = vsel %vm371, %v348, 0.0
    %v396 = vadd.f32 %v394, %v395
    %v397 = vsel %vm371, %v350, 0.0
    %v398 = vadd.f32 %v396, %v397
    %v399 = vsel %vm371, %v352, 0.0
    %v400 = vadd.f32 %v398, %v399
    %v401 = vsel %vm371, %v354, 0.0
    %v402 = vadd.f32 %v400, %v401
    %403 = vadd.xlane.f32.xlu0 %v402
    %v404 = vpop.xlane.xlu0 %403
    %v405 = vrot.slane %v404, 4
    %v406 = vadd.f32 %v404, %v405
    %v407 = vrot.slane %v406, 2
    %v408 = vadd.f32 %v406, %v407
    %v409 = vrot.slane %v408, 1
    %v410 = vadd.f32 %v408, %v409
    %s411 = vtos %v410
    %v412 = vlaneseq
    %v413 = vand.u32 %v412, 127
    %vm414 = vcmp.eq.s32.totalorder %v413, 0
    %vm415 = vcmp.eq.s32.totalorder %v413, 1
    %v416 = vstv %s411
    %v417 = vsel %vm415, %v416, 0.0
    %v418 = vstv %s306
    %v419 = vsel %vm414, %v418, %v417
    %420 = vst [vmem:[#allocation5] sm:$0x1] %v419
    // Predicated region
    $region10: #{tpu_custom_call.1} parent=1 // pred_check
      _
    $region11: #{tpu_custom_call.1} parent=1 // pred_check_branch
      %422 = sbr.rel (0) target = $region13
    $region12: #{tpu_custom_call.1} parent=1 // pred_region
      %s424 = ssub.s32 16, 16
      %425 = vsyncadd [#allocation4], %s424
      %s427 = sshll.u32 [#allocation5], 4
      %s428 = int_to_ptr.vmem [resolvable:$true] %s427
      %430 = dma.vmem_to_hbm [thread:$0]  %s428, 16, %s1, [#allocation4]
    $region13: #{tpu_custom_call.1} parent=1 // pred_fallthru
      _
    // Predicated region
    $region14: #{tpu_custom_call.1} parent=1 // pred_check
      _
    $region15: #{tpu_custom_call.1} parent=1 // pred_check_branch
      %432 = sbr.rel (0) target = $region17
    $region16: #{tpu_custom_call.1} parent=1 // pred_region
      %433 = dma.done [#allocation4], 16
    $region17: #{tpu_custom_call.1} parent=1 // pred_fallthru
      _
    %434 = vsyncpa [#allocation3], 1
    %435 = vsyncpa [#allocation4], 1

</llo_original>
